<compile_context>
chip_gen: v5e
topology: v5e:2x2
jax: 0.10.0
libtpu: 0.0.40
codegen_flags: <defaults>
</compile_context>

<pallas_src>
import math
import functools

import jax
import jax.numpy as jnp
from jax.experimental import pallas as pl
from jax.experimental.pallas import tpu as pltpu


# Safe instead of -inf because the ki == 0 KV block is always processed and
# leaves column 0 unmasked for every query row, so m/l are finite afterwards.
_NEG_INF = -1e30


def _vmem_limit_bytes():
    """3/4 of the chip's VMEM (96 MiB on v5e/v6e, 48 MiB on v7x); safe fallback."""
    cap = 64 * 1024 * 1024  # conservative fallback (v7x-sized)
    try:
        info = pltpu.get_tpu_info()
        cap = int(getattr(info, "vmem_capacity_bytes", cap))
    except Exception:
        pass
    return max(32 * 1024 * 1024, min((cap * 3) // 4, 112 * 1024 * 1024))


def _divisor_from(n, candidates):
    for c in candidates:
        if n % c == 0:
            return c
    return n


def _flash_vmem_bytes(tq, tk, hs, C, itemsize):
    native = (2 * tq * hs          # q (double-buffered)
              + 2 * 2 * tk * hs    # k, v
              + 2 * hs * C         # Wp head slab
              + 2 * C              # bp
              + 2 * tq * C)        # output tile
    scratch = (2 * tq + tq * hs + tq * C) * 4   # f32 m, l, acc, out accumulators
    return native * itemsize + scratch


def _pick_tiles(T, hs, C, itemsize, vmem_limit):
    budget = vmem_limit // 2           # headroom for pipelining + the QKV kernel
    tk = _divisor_from(T, (256, 128, 64, 32, 16, 8))
    for cand in (1024, 512, 256, 128, 64, 32, 16, 8):
        if T % cand == 0 and _flash_vmem_bytes(cand, tk, hs, C, itemsize) <= budget:
            return cand, tk
    return _divisor_from(T, (8,)), tk


# ---------------------------------------------------------------------------
# Kernel 1: fused per-head QKV projection.
# grid = (B, T//tq, H); H innermost so the x tile is DMA'd once per (b, i).
# ---------------------------------------------------------------------------
def _qkv_kernel(x_ref, w_ref, b_ref, q_ref, k_ref, v_ref, *, hs):
    x = x_ref[0]                                              # (tq, C) native dtype
    qkv = (jnp.dot(x, w_ref[0], preferred_element_type=jnp.float32)
           + b_ref[0])                                        # (tq, 3*hs) f32
    q_ref[0, 0] = qkv[:, :hs].astype(q_ref.dtype)             # scale already folded in
    k_ref[0, 0] = qkv[:, hs:2 * hs].astype(k_ref.dtype)
    v_ref[0, 0] = qkv[:, 2 * hs:].astype(v_ref.dtype)


# ---------------------------------------------------------------------------
# Kernel 2: flash-style causal attention fused with the output projection.
# grid = (B, T//tq, H, T//tk); H and KV axes are "arbitrary" reductions.
# ---------------------------------------------------------------------------
def _attn_proj_kernel(q_ref, k_ref, v_ref, wp_ref, bp_ref, o_ref,
                      m_sc, l_sc, acc_sc, out_sc, *, tq, tk):
    qi = pl.program_id(1)
    h = pl.program_id(2)
    ki = pl.program_id(3)
    last_h = pl.num_programs(2) - 1
    last_k = pl.num_programs(3) - 1

    @pl.when(jnp.logical_and(h == 0, ki == 0))
    def _init_out():
        out_sc[...] = jnp.zeros(out_sc.shape, jnp.float32)

    @pl.when(ki == 0)
    def _init_stats():
        m_sc[...] = jnp.full(m_sc.shape, -jnp.inf, jnp.float32)
        l_sc[...] = jnp.zeros(l_sc.shape, jnp.float32)
        acc_sc[...] = jnp.zeros(acc_sc.shape, jnp.float32)

    q_row0 = qi * tq
    k_col0 = ki * tk
    in_range = k_col0 <= q_row0 + (tq - 1)          # block not entirely above diag
    straddles = (k_col0 + tk - 1) > q_row0          # block needs elementwise mask

    def flash_step(apply_mask):
        q = q_ref[0, 0]                             # (tq, hs); 1/sqrt(hs) pre-folded
        k = k_ref[0, 0]                             # (tk, hs)
        v = v_ref[0, 0]                             # (tk, hs)
        s = jax.lax.dot_general(q, k, (((1,), (1,)), ((), ())),
                                preferred_element_type=jnp.float32)   # (tq, tk)
        if apply_mask:
            row = q_row0 + jax.lax.broadcasted_iota(jnp.int32, (tq, tk), 0)
            col = k_col0 + jax.lax.broadcasted_iota(jnp.int32, (tq, tk), 1)
            s = jnp.where(col <= row, s, _NEG_INF)
        m_prev = m_sc[...]
        m_new = jnp.maximum(m_prev, jnp.max(s, axis=-1, keepdims=True))
        alpha = jnp.exp(m_prev - m_new)
        p = jnp.exp(s - m_new)
        l_sc[...] = alpha * l_sc[...] + jnp.sum(p, axis=-1, keepdims=True)
        acc_sc[...] = alpha * acc_sc[...] + jnp.dot(
            p.astype(v.dtype), v, preferred_element_type=jnp.float32)
        m_sc[...] = m_new

    @pl.when(jnp.logical_and(in_range, straddles))
    def _masked():
        flash_step(True)

    @pl.when(jnp.logical_and(in_range, jnp.logical_not(straddles)))
    def _unmasked():
        flash_step(False)

    @pl.when(ki == last_k)
    def _project_head():
        inv_l = pl.reciprocal(l_sc[...], approx=True)     # EUP, once per (q tile, head)
        y = (acc_sc[...] * inv_l).astype(wp_ref.dtype)    # (tq, hs) native dtype
        out_sc[...] += jnp.dot(y, wp_ref[0], preferred_element_type=jnp.float32)

    @pl.when(jnp.logical_and(ki == last_k, h == last_h))
    def _write():
        o_ref[0] = (out_sc[...] + bp_ref[...]).astype(o_ref.dtype)


# ---------------------------------------------------------------------------
# Wrapper
# ---------------------------------------------------------------------------
def causal_self_attention(x, w_attn, b_attn, w_proj, b_proj, n_head,
                          *, q_block=None, kv_block=None):
    """x: (B, T, C); w_attn: (C, 3C); b_attn: (3C,); w_proj: (C, C); b_proj: (C,)."""
    B, T, C = x.shape
    H = n_head
    assert C % H == 0, "embedding dim must be divisible by number of heads"
    hs = C // H
    dtype = x.dtype
    itemsize = jnp.dtype(dtype).itemsize

    vmem_limit = _vmem_limit_bytes()
    auto_tq, auto_tk = _pick_tiles(T, hs, C, itemsize, vmem_limit)
    tq = q_block if q_block is not None else auto_tq
    tk = kv_block if kv_block is not None else auto_tk
    assert T % tq == 0 and T % tk == 0
    nq, nk = T // tq, T // tk

    # ---- host-side layout plumbing (pure XLA, once per call) ----------------
    scale = 1.0 / math.sqrt(hs)
    col_scale = jnp.concatenate(
        [jnp.full((C,), scale, jnp.float32), jnp.ones((2 * C,), jnp.float32)])
    w_attn_s = w_attn.astype(jnp.float32) * col_scale     # fold 1/sqrt(hs) into Q
    b_attn_s = b_attn.astype(jnp.float32) * col_scale

    # Per-head fused QKV slabs: columns of slab h are [Q_h | K_h | V_h].
    w_qkv = jnp.transpose(w_attn_s.reshape(C, 3, H, hs),
                          (2, 0, 1, 3)).reshape(H, C, 3 * hs).astype(dtype)
    b_qkv = jnp.transpose(b_attn_s.reshape(3, H, hs),
                          (1, 0, 2)).reshape(H, 1, 3 * hs).astype(dtype)
    w_p = w_proj.reshape(H, hs, C).astype(dtype)           # row block h of W_proj
    b_p = b_proj.reshape(1, C).astype(dtype)

    # ---- 1) fused per-head QKV projection -----------------------------------
    q, k, v = pl.pallas_call(
        functools.partial(_qkv_kernel, hs=hs),
        out_shape=tuple(jax.ShapeDtypeStruct((B, H, T, hs), dtype)
                        for _ in range(3)),
        grid_spec=pltpu.PrefetchScalarGridSpec(
            num_scalar_prefetch=0,
            grid=(B, nq, H),
            in_specs=[
                pl.BlockSpec((1, tq, C), lambda b, i, h: (b, i, 0)),       # x (elided over H)
                pl.BlockSpec((1, C, 3 * hs), lambda b, i, h: (h, 0, 0)),   # Wqkv[h]
                pl.BlockSpec((1, 1, 3 * hs), lambda b, i, h: (h, 0, 0)),   # bqkv[h]
            ],
            out_specs=(
                pl.BlockSpec((1, 1, tq, hs), lambda b, i, h: (b, h, i, 0)),
                pl.BlockSpec((1, 1, tq, hs), lambda b, i, h: (b, h, i, 0)),
                pl.BlockSpec((1, 1, tq, hs), lambda b, i, h: (b, h, i, 0)),
            ),
        ),
        compiler_params=pltpu.CompilerParams(
            dimension_semantics=("parallel", "parallel", "arbitrary"),
            vmem_limit_bytes=vmem_limit,
        ),
        cost_estimate=pl.CostEstimate(
            flops=2 * B * T * C * 3 * C,
            transcendentals=0,
            bytes_accessed=(B * T * C + B * nq * 3 * C * C + 3 * C
                            + 3 * B * T * C) * itemsize,
        ),
    )(x, w_qkv, b_qkv)

    # ---- 2) flash attention fused with output projection ---------------------
    out = pl.pallas_call(
        functools.partial(_attn_proj_kernel, tq=tq, tk=tk),
        out_shape=jax.ShapeDtypeStruct((B, T, C), dtype),
        grid_spec=pltpu.PrefetchScalarGridSpec(
            num_scalar_prefetch=0,
            grid=(B, nq, H, nk),
            in_specs=[
                pl.BlockSpec((1, 1, tq, hs),
                             lambda b, i, h, j: (b, h, i, 0)),             # q (elided over j)
                # K/V block index clamped to the last causally-needed block:
                # above-diagonal steps repeat it, so their DMA is elided.
                pl.BlockSpec((1, 1, tk, hs),
                             lambda b, i, h, j:
                             (b, h, jnp.minimum(j, (i * tq + tq - 1) // tk), 0)),
                pl.BlockSpec((1, 1, tk, hs),
                             lambda b, i, h, j:
                             (b, h, jnp.minimum(j, (i * tq + tq - 1) // tk), 0)),
                pl.BlockSpec((1, hs, C), lambda b, i, h, j: (h, 0, 0)),    # Wp[h]
                pl.BlockSpec((1, C), lambda b, i, h, j: (0, 0)),           # bp
            ],
            out_specs=pl.BlockSpec((1, tq, C), lambda b, i, h, j: (b, i, 0)),
            scratch_shapes=[
                pltpu.VMEM((tq, 1), jnp.float32),    # running max m
                pltpu.VMEM((tq, 1), jnp.float32),    # running sum l
                pltpu.VMEM((tq, hs), jnp.float32),   # per-head attention accumulator
                pltpu.VMEM((tq, C), jnp.float32),    # projected output accumulator
            ],
        ),
        compiler_params=pltpu.CompilerParams(
            dimension_semantics=("parallel", "parallel", "arbitrary", "arbitrary"),
            vmem_limit_bytes=vmem_limit,
        ),
        cost_estimate=pl.CostEstimate(
            flops=2 * B * H * T * T * hs + 2 * B * T * C * C,
            transcendentals=B * H * T * T // 2,
            bytes_accessed=(B * T * C                              # q
                            + 2 * B * H * hs * T * (nq + 1) // 2   # k, v (causal)
                            + B * nq * C * C + C                   # Wp, bp
                            + B * T * C) * itemsize,               # out
        ),
    )(q, k, v, w_p, b_p)
    return out


# ---------------------------------------------------------------------------
# Pure-JAX reference mirroring the PyTorch forward.
# ---------------------------------------------------------------------------
def _reference(x, w_attn, b_attn, w_proj, b_proj, n_head):
    B, T, C = x.shape
    hs = C // n_head
    qkv = x @ w_attn + b_attn
    q, k, v = jnp.split(qkv, 3, axis=2)
    q = q.reshape(B, T, n_head, hs).transpose(0, 2, 1, 3)
    k = k.reshape(B, T, n_head, hs).transpose(0, 2, 1, 3)
    v = v.reshape(B, T, n_head, hs).transpose(0, 2, 1, 3)
    s = jnp.einsum("bhtd,bhsd->bhts", q, k) / math.sqrt(hs)
    mask = jnp.tril(jnp.ones((T, T), dtype=bool))
    s = jnp.where(mask, s, -jnp.inf)
    p = jax.nn.softmax(s, axis=-1)
    y = jnp.einsum("bhts,bhsd->bhtd", p, v)
    y = y.transpose(0, 2, 1, 3).reshape(B, T, C)
    return y @ w_proj + b_proj


if __name__ == "__main__":
    # Small shapes consistent with the module: B=2, T=32, n_embd=64, n_head=8.
    B, T, C, H = 2, 32, 64, 8

    key = jax.random.PRNGKey(0)
    kx, kwa, kba, kwp, kbp = jax.random.split(key, 5)

    bound = 1.0 / math.sqrt(C)
    x = jax.random.normal(kx, (B, T, C), dtype=jnp.float32)
    w_attn = jax.random.uniform(kwa, (C, 3 * C), jnp.float32, -bound, bound)
    b_attn = jax.random.uniform(kba, (3 * C,), jnp.float32, -bound, bound)
    w_proj = jax.random.uniform(kwp, (C, C), jnp.float32, -bound, bound)
    b_proj = jax.random.uniform(kbp, (C,), jnp.float32, -bound, bound)

    ref = _reference(x, w_attn, b_attn, w_proj, b_proj, H)

    # Forced 16x16 tiles: exercises init/accumulate/finalize, masked and
    # unmasked flash branches, causal DMA clamp, and head-fused projection.
    out = causal_self_attention(x, w_attn, b_attn, w_proj, b_proj, H,
                                q_block=16, kv_block=16)
    out = jax.block_until_ready(out)
    assert out.shape == (B, T, C)
    assert jnp.allclose(out, ref, atol=2e-3, rtol=2e-3), "mismatch vs reference"

    # Auto (VMEM-aware) tile selection path.
    out_auto = causal_self_attention(x, w_attn, b_attn, w_proj, b_proj, H)
    out_auto = jax.block_until_ready(out_auto)
    assert jnp.allclose(out_auto, ref, atol=2e-3, rtol=2e-3), "auto-tile mismatch"

    # bf16 smoke test: native low-precision MXU operands, f32 accumulation.
    out_bf16 = causal_self_attention(x.astype(jnp.bfloat16), w_attn, b_attn,
                                     w_proj, b_proj, H, q_block=16, kv_block=16)
    out_bf16 = jax.block_until_ready(out_bf16)
    assert out_bf16.shape == (B, T, C)
    assert bool(jnp.all(jnp.isfinite(out_bf16.astype(jnp.float32))))

    print("KERNEL_OK")
</pallas_src>

<mosaic_0001>
module attributes {stable_mosaic.version = 11 : i64} {
  func.func @_qkv_kernel(%arg0: i32, %arg1: i32, %arg2: i32, %arg3: memref<1x16x64xf32, #tpu.memory_space<vmem>>, %arg4: memref<1x64x24xf32, #tpu.memory_space<vmem>>, %arg5: memref<1x1x24xf32, #tpu.memory_space<vmem>>, %arg6: memref<1x1x16x8xf32, #tpu.memory_space<vmem>>, %arg7: memref<1x1x16x8xf32, #tpu.memory_space<vmem>>, %arg8: memref<1x1x16x8xf32, #tpu.memory_space<vmem>>) attributes {dimension_semantics = [#tpu.dimension_semantics<parallel>, #tpu.dimension_semantics<parallel>, #tpu.dimension_semantics<arbitrary>], iteration_bounds = array<i64: 2, 2, 8>, scalar_prefetch = 0 : i64, scratch_operands = 0 : i64, tpu.core_type = #tpu.core_type<tc>, window_params = [{transform_indices = @transform_0, window_bounds = array<i64: 1, 16, 64>}, {transform_indices = @transform_1, window_bounds = array<i64: 1, 64, 24>}, {transform_indices = @transform_2, window_bounds = array<i64: 1, 1, 24>}, {transform_indices = @transform_3, window_bounds = array<i64: 1, 1, 16, 8>}, {transform_indices = @transform_4, window_bounds = array<i64: 1, 1, 16, 8>}, {transform_indices = @transform_5, window_bounds = array<i64: 1, 1, 16, 8>}]} {
    %c0 = arith.constant 0 : index
    %c0_0 = arith.constant 0 : index
    %c0_1 = arith.constant 0 : index
    %0 = vector.load %arg3[%c0, %c0_0, %c0_1] : memref<1x16x64xf32, #tpu.memory_space<vmem>>, vector<1x16x64xf32>
    %1 = vector.shape_cast %0 : vector<1x16x64xf32> to vector<16x64xf32>
    %c0_2 = arith.constant 0 : index
    %c0_3 = arith.constant 0 : index
    %c0_4 = arith.constant 0 : index
    %2 = vector.load %arg4[%c0_2, %c0_3, %c0_4] : memref<1x64x24xf32, #tpu.memory_space<vmem>>, vector<1x64x24xf32>
    %3 = vector.shape_cast %2 : vector<1x64x24xf32> to vector<64x24xf32>
    %cst = arith.constant dense<0.000000e+00> : vector<16x24xf32>
    %4 = tpu.matmul %1, %3, %cst {dimension_numbers = #tpu.dot_dimension_numbers<[1], [0], [0], [1], [0, 0, 1, 1], [], []>} : vector<16x64xf32>, vector<64x24xf32>, vector<16x24xf32> -> vector<16x24xf32>
    %c0_5 = arith.constant 0 : index
    %c0_6 = arith.constant 0 : index
    %c0_7 = arith.constant 0 : index
    %5 = vector.load %arg5[%c0_5, %c0_6, %c0_7] : memref<1x1x24xf32, #tpu.memory_space<vmem>>, vector<1x1x24xf32>
    %6 = vector.shape_cast %5 : vector<1x1x24xf32> to vector<1x24xf32>
    %7 = vector.broadcast %6 : vector<1x24xf32> to vector<16x24xf32>
    %8 = arith.addf %4, %7 : vector<16x24xf32>
    %9 = vector.extract_strided_slice %8 {offsets = [0, 0], sizes = [16, 8], strides = [1, 1]} : vector<16x24xf32> to vector<16x8xf32>
    %c0_8 = arith.constant 0 : index
    %c0_9 = arith.constant 0 : index
    %c0_10 = arith.constant 0 : index
    %c0_11 = arith.constant 0 : index
    %10 = vector.load %arg6[%c0_8, %c0_9, %c0_10, %c0_11] : memref<1x1x16x8xf32, #tpu.memory_space<vmem>>, vector<1x1x16x8xf32>
    %11 = vector.shape_cast %10 : vector<1x1x16x8xf32> to vector<16x8xf32>
    %12 = vector.shape_cast %9 : vector<16x8xf32> to vector<1x1x16x8xf32>
    tpu.vector_store %arg6[%c0_8, %c0_9, %c0_10, %c0_11], %12 {strides = array<i32>} : memref<1x1x16x8xf32, #tpu.memory_space<vmem>>, vector<1x1x16x8xf32>,
    %13 = vector.extract_strided_slice %8 {offsets = [0, 8], sizes = [16, 8], strides = [1, 1]} : vector<16x24xf32> to vector<16x8xf32>
    %c0_12 = arith.constant 0 : index
    %c0_13 = arith.constant 0 : index
    %c0_14 = arith.constant 0 : index
    %c0_15 = arith.constant 0 : index
    %14 = vector.load %arg7[%c0_12, %c0_13, %c0_14, %c0_15] : memref<1x1x16x8xf32, #tpu.memory_space<vmem>>, vector<1x1x16x8xf32>
    %15 = vector.shape_cast %14 : vector<1x1x16x8xf32> to vector<16x8xf32>
    %16 = vector.shape_cast %13 : vector<16x8xf32> to vector<1x1x16x8xf32>
    tpu.vector_store %arg7[%c0_12, %c0_13, %c0_14, %c0_15], %16 {strides = array<i32>} : memref<1x1x16x8xf32, #tpu.memory_space<vmem>>, vector<1x1x16x8xf32>,
    %17 = vector.extract_strided_slice %8 {offsets = [0, 16], sizes = [16, 8], strides = [1, 1]} : vector<16x24xf32> to vector<16x8xf32>
    %c0_16 = arith.constant 0 : index
    %c0_17 = arith.constant 0 : index
    %c0_18 = arith.constant 0 : index
    %c0_19 = arith.constant 0 : index
    %18 = vector.load %arg8[%c0_16, %c0_17, %c0_18, %c0_19] : memref<1x1x16x8xf32, #tpu.memory_space<vmem>>, vector<1x1x16x8xf32>
    %19 = vector.shape_cast %18 : vector<1x1x16x8xf32> to vector<16x8xf32>
    %20 = vector.shape_cast %17 : vector<16x8xf32> to vector<1x1x16x8xf32>
    tpu.vector_store %arg8[%c0_16, %c0_17, %c0_18, %c0_19], %20 {strides = array<i32>} : memref<1x1x16x8xf32, #tpu.memory_space<vmem>>, vector<1x1x16x8xf32>,
    return
  }
  func.func @transform_0(%arg0: i32, %arg1: i32, %arg2: i32) -> (i32, i32, i32) {
    %c0_i32 = arith.constant 0 : i32
    %c0_i32_0 = arith.constant 0 : i32
    return %arg0, %arg1, %c0_i32 : i32, i32, i32
  }
  func.func @transform_1(%arg0: i32, %arg1: i32, %arg2: i32) -> (i32, i32, i32) {
    %c0_i32 = arith.constant 0 : i32
    %c0_i32_0 = arith.constant 0 : i32
    %c0_i32_1 = arith.constant 0 : i32
    return %arg2, %c0_i32, %c0_i32_0 : i32, i32, i32
  }
  func.func @transform_2(%arg0: i32, %arg1: i32, %arg2: i32) -> (i32, i32, i32) {
    %c0_i32 = arith.constant 0 : i32
    %c0_i32_0 = arith.constant 0 : i32
    %c0_i32_1 = arith.constant 0 : i32
    return %arg2, %c0_i32, %c0_i32_0 : i32, i32, i32
  }
  func.func @transform_3(%arg0: i32, %arg1: i32, %arg2: i32) -> (i32, i32, i32, i32) {
    %c0_i32 = arith.constant 0 : i32
    %c0_i32_0 = arith.constant 0 : i32
    return %arg0, %arg2, %arg1, %c0_i32 : i32, i32, i32, i32
  }
  func.func @transform_4(%arg0: i32, %arg1: i32, %arg2: i32) -> (i32, i32, i32, i32) {
    %c0_i32 = arith.constant 0 : i32
    %c0_i32_0 = arith.constant 0 : i32
    return %arg0, %arg2, %arg1, %c0_i32 : i32, i32, i32, i32
  }
  func.func @transform_5(%arg0: i32, %arg1: i32, %arg2: i32) -> (i32, i32, i32, i32) {
    %c0_i32 = arith.constant 0 : i32
    %c0_i32_0 = arith.constant 0 : i32
    return %arg0, %arg2, %arg1, %c0_i32 : i32, i32, i32, i32
  }
}

</mosaic_0001>

<llo_original>
// kernel: tpu_custom_call.1
$region0: #{tpu_custom_call.1}
  #allocation0 [shape = 'u32[]', space=smem, size = 0x4, offset = 0x4, fixed_abs, tag = 'smem constant byte address 0x4 - core index']
  #allocation1 [shape = 'u32[72,128]{1,0:T(1,128)}', space=vmem, size = 0x9000, scoped, tag = 'internal scratch']
  %s0 = inlined_call_operand.vmem [shape: f32[2,32,64], index: 0, kind: input, shape index: {}]
  %s1 = inlined_call_operand.vmem [shape: f32[8,64,24], index: 1, kind: input, shape index: {}]
  %s2 = inlined_call_operand.vmem [shape: f32[8,1,24], index: 2, kind: input, shape index: {}]
  %s3 = inlined_call_operand.vmem [shape: f32[2,8,32,8], index: 3, kind: output, shape index: {0}]
  %s4 = inlined_call_operand.vmem [shape: f32[2,8,32,8], index: 4, kind: output, shape index: {1}]
  %s5 = inlined_call_operand.vmem [shape: f32[2,8,32,8], index: 5, kind: output, shape index: {2}]
  %6 = xla_tuple %s3, %s4, %s5
  %s7 = sld [smem:[#allocation0]]
  $region61: #{tpu_custom_call.1} parent=0
    _
  %s9 = ssub.s32 1, %s7
  %s10 = scalar_select 0, %s9, %s7
  loop: start=0, step=1, limit=34
  $region2: #{tpu_custom_call.1} parent=0 // loop_pre_header
    _
  $region3: #{tpu_custom_call.1} parent=0 // loop_header
    %s12 = sphi 0, %s16
    %p13 = scmp.ge.s32.totalorder %s12, 34
    %s19 = sphi 0, %s38
    %s20 = sphi 0, %s34
    %s21 = sphi 0, %s30
    %s22 = sphi 0, %s19
    %s23 = sphi 0, %s20
    %s24 = sphi 0, %s21
    %s25 = sphi 0, %s22
    %s26 = sphi 0, %s23
    %s27 = sphi 0, %s24
    %s43 = sphi 0, %s45
    %s46 = sphi 0, %s43
    %s47 = sphi 0, %s46
    %s63 = sphi 0, %s47
    %s69 = sphi 0, %s71
    %s72 = sphi 0, %s69
    %s73 = sphi 0, %s72
    %s89 = sphi 0, %s73
    %s95 = sphi 0, %s97
    %s98 = sphi 0, %s95
    %s99 = sphi 0, %s98
    %s115 = sphi 0, %s99
    %s125 = sphi 0, %s127
    %s128 = sphi 0, %s125
    %s129 = sphi 0, %s128
    %s145 = sphi 0, %s129
    %s155 = sphi 0, %s157
    %s158 = sphi 0, %s155
    %s159 = sphi 0, %s158
    %s175 = sphi 0, %s159
    %s185 = sphi 0, %s187
    %s188 = sphi 0, %s185
    %s189 = sphi 0, %s188
    %s205 = sphi 0, %s189
  $region4: #{tpu_custom_call.1} parent=0 // loop_header_branch
    %15 = sbr.rel (%p13) target = $region8
  $region5: #{tpu_custom_call.1} parent=0 // loop_body
    %s17 = ssub.s32 %s12, 1
    %s18 = ssub.s32 %s12, 2
    %s28 = sadd.s32 1, %s21
    %p29 = scmp.ge.s32.totalorder %s28, 8
    %s30 = scalar_select %p29, 0, %s28
    %s31 = sadd.s32 1, %s20
    %s32 = scalar_select %p29, %s31, %s20
    %p33 = scmp.ge.s32.totalorder %s32, 2
    %s34 = scalar_select %p33, 0, %s32
    %s35 = sadd.s32 1, %s19
    %s36 = scalar_select %p33, %s35, %s19
    %p37 = scmp.ge.s32.totalorder %s36, 2
    %s38 = scalar_select %p37, 0, %s36
    %s39 = ssub.s32 %s19, %s38
    %s40 = ssub.s32 %s20, %s34
    %s41 = sor.u32 %s39, %s40
    %p42 = scmp.eq.s32.totalorder %s41, 0
    %s44 = sadd.s32 %s43, 1
    %s45 = scalar_select %p42, %s43, %s44
    %p48 = pneg %p42
    %p49 = scmp.eq.s32.totalorder %s12, 31
    %p50 = por %p48, %p49
    %p51 = scmp.ne.s32.totalorder %s43, %s46
    %p52 = scmp.eq.s32.totalorder %s12, 0
    %p53 = por %p51, %p52
    %p54 = scmp.ne.s32.totalorder %s43, %s46
    %p55 = scmp.eq.s32.totalorder %s17, 31
    %p56 = por %p54, %p55
    %p57 = scmp.ne.s32.totalorder %s46, %s47
    %p58 = scmp.eq.s32.totalorder %s17, 0
    %p59 = por %p57, %p58
    %p60 = scmp.ne.s32.totalorder %s46, %s47
    %p61 = scmp.eq.s32.totalorder %s18, 31
    %p62 = por %p60, %p61
    %p64 = scmp.ne.s32.totalorder %s47, %s63
    %p65 = scmp.eq.s32.totalorder %s18, 0
    %p66 = por %p64, %p65
    %s67 = ssub.s32 %s21, %s30
    %p68 = scmp.eq.s32.totalorder %s67, 0
    %s70 = sadd.s32 %s69, 1
    %s71 = scalar_select %p68, %s69, %s70
    %p74 = pneg %p68
    %p75 = scmp.eq.s32.totalorder %s12, 31
    %p76 = por %p74, %p75
    %p77 = scmp.ne.s32.totalorder %s69, %s72
    %p78 = scmp.eq.s32.totalorder %s12, 0
    %p79 = por %p77, %p78
    %p80 = scmp.ne.s32.totalorder %s69, %s72
    %p81 = scmp.eq.s32.totalorder %s17, 31
    %p82 = por %p80, %p81
    %p83 = scmp.ne.s32.totalorder %s72, %s73
    %p84 = scmp.eq.s32.totalorder %s17, 0
    %p85 = por %p83, %p84
    %p86 = scmp.ne.s32.totalorder %s72, %s73
    %p87 = scmp.eq.s32.totalorder %s18, 31
    %p88 = por %p86, %p87
    %p90 = scmp.ne.s32.totalorder %s73, %s89
    %p91 = scmp.eq.s32.totalorder %s18, 0
    %p92 = por %p90, %p91
    %s93 = ssub.s32 %s21, %s30
    %p94 = scmp.eq.s32.totalorder %s93, 0
    %s96 = sadd.s32 %s95, 1
    %s97 = scalar_select %p94, %s95, %s96
    %p100 = pneg %p94
    %p101 = scmp.eq.s32.totalorder %s12, 31
    %p102 = por %p100, %p101
    %p103 = scmp.ne.s32.totalorder %s95, %s98
    %p104 = scmp.eq.s32.totalorder %s12, 0
    %p105 = por %p103, %p104
    %p106 = scmp.ne.s32.totalorder %s95, %s98
    %p107 = scmp.eq.s32.totalorder %s17, 31
    %p108 = por %p106, %p107
    %p109 = scmp.ne.s32.totalorder %s98, %s99
    %p110 = scmp.eq.s32.totalorder %s17, 0
    %p111 = por %p109, %p110
    %p112 = scmp.ne.s32.totalorder %s98, %s99
    %p113 = scmp.eq.s32.totalorder %s18, 31
    %p114 = por %p112, %p113
    %p116 = scmp.ne.s32.totalorder %s99, %s115
    %p117 = scmp.eq.s32.totalorder %s18, 0
    %p118 = por %p116, %p117
    %s119 = ssub.s32 %s19, %s38
    %s120 = ssub.s32 %s21, %s30
    %s121 = sor.u32 %s119, %s120
    %s122 = ssub.s32 %s20, %s34
    %s123 = sor.u32 %s121, %s122
    %p124 = scmp.eq.s32.totalorder %s123, 0
    %s126 = sadd.s32 %s125, 1
    %s127 = scalar_select %p124, %s125, %s126
    %p130 = pneg %p124
    %p131 = scmp.eq.s32.totalorder %s12, 31
    %p132 = por %p130, %p131
    %p133 = scmp.ne.s32.totalorder %s125, %s128
    %p134 = scmp.eq.s32.totalorder %s12, 0
    %p135 = por %p133, %p134
    %p136 = scmp.ne.s32.totalorder %s125, %s128
    %p137 = scmp.eq.s32.totalorder %s17, 31
    %p138 = por %p136, %p137
    %p139 = scmp.ne.s32.totalorder %s128, %s129
    %p140 = scmp.eq.s32.totalorder %s17, 0
    %p141 = por %p139, %p140
    %p142 = scmp.ne.s32.totalorder %s128, %s129
    %p143 = scmp.eq.s32.totalorder %s18, 31
    %p144 = por %p142, %p143
    %p146 = scmp.ne.s32.totalorder %s129, %s145
    %p147 = scmp.eq.s32.totalorder %s18, 0
    %p148 = por %p146, %p147
    %s149 = ssub.s32 %s19, %s38
    %s150 = ssub.s32 %s21, %s30
    %s151 = sor.u32 %s149, %s150
    %s152 = ssub.s32 %s20, %s34
    %s153 = sor.u32 %s151, %s152
    %p154 = scmp.eq.s32.totalorder %s153, 0
    %s156 = sadd.s32 %s155, 1
    %s157 = scalar_select %p154, %s155, %s156
    %p160 = pneg %p154
    %p161 = scmp.eq.s32.totalorder %s12, 31
    %p162 = por %p160, %p161
    %p163 = scmp.ne.s32.totalorder %s155, %s158
    %p164 = scmp.eq.s32.totalorder %s12, 0
    %p165 = por %p163, %p164
    %p166 = scmp.ne.s32.totalorder %s155, %s158
    %p167 = scmp.eq.s32.totalorder %s17, 31
    %p168 = por %p166, %p167
    %p169 = scmp.ne.s32.totalorder %s158, %s159
    %p170 = scmp.eq.s32.totalorder %s17, 0
    %p171 = por %p169, %p170
    %p172 = scmp.ne.s32.totalorder %s158, %s159
    %p173 = scmp.eq.s32.totalorder %s18, 31
    %p174 = por %p172, %p173
    %p176 = scmp.ne.s32.totalorder %s159, %s175
    %p177 = scmp.eq.s32.totalorder %s18, 0
    %p178 = por %p176, %p177
    %s179 = ssub.s32 %s19, %s38
    %s180 = ssub.s32 %s21, %s30
    %s181 = sor.u32 %s179, %s180
    %s182 = ssub.s32 %s20, %s34
    %s183 = sor.u32 %s181, %s182
    %p184 = scmp.eq.s32.totalorder %s183, 0
    %s186 = sadd.s32 %s185, 1
    %s187 = scalar_select %p184, %s185, %s186
    %p190 = pneg %p184
    %p191 = scmp.eq.s32.totalorder %s12, 31
    %p192 = por %p190, %p191
    %p193 = scmp.ne.s32.totalorder %s185, %s188
    %p194 = scmp.eq.s32.totalorder %s12, 0
    %p195 = por %p193, %p194
    %p196 = scmp.ne.s32.totalorder %s185, %s188
    %p197 = scmp.eq.s32.totalorder %s17, 31
    %p198 = por %p196, %p197
    %p199 = scmp.ne.s32.totalorder %s188, %s189
    %p200 = scmp.eq.s32.totalorder %s17, 0
    %p201 = por %p199, %p200
    %p202 = scmp.ne.s32.totalorder %s188, %s189
    %p203 = scmp.eq.s32.totalorder %s18, 31
    %p204 = por %p202, %p203
    %p206 = scmp.ne.s32.totalorder %s189, %s205
    %p207 = scmp.eq.s32.totalorder %s18, 0
    %p208 = por %p206, %p207
    %p209 = scmp.le.s32.totalorder 1, %s12
    %p210 = scmp.lt.s32.totalorder %s12, 33
    %p211 = pnand %p209, %p210
    %p212 = pneg %p211
    // Predicated region
    $region9: #{tpu_custom_call.1} parent=5 // pred_check
      _
    $region10: #{tpu_custom_call.1} parent=5 // pred_check_branch
      %214 = sbr.rel (%p211) target = $region12
    $region11: #{tpu_custom_call.1} parent=5 // pred_region
      %s215 = ssub.s32 %s12, 1
    $region12: #{tpu_custom_call.1} parent=5 // pred_fallthru
      _
    %p216 = scmp.lt.s32.totalorder %s12, 32
    // Predicated region
    $region13: #{tpu_custom_call.1} parent=5 // pred_check
      %p217 = pneg %p216
    $region14: #{tpu_custom_call.1} parent=5 // pred_check_branch
      %219 = sbr.rel (%p217) target = $region16
    $region15: #{tpu_custom_call.1} parent=5 // pred_region
      // Predicated region
      $region17: #{tpu_custom_call.1} parent=15 // pred_check
        %p220 = pneg %p53
      $region18: #{tpu_custom_call.1} parent=15 // pred_check_branch
        %222 = sbr.rel (%p220) target = $region20
      $region19: #{tpu_custom_call.1} parent=15 // pred_region
        %s223 = smul.u32 2, %s20
        %p224 = scmp.lt.s32.totalorder %s19, 1
        %s225 = scalar_select %p224, %s19, 1
        %p226 = scmp.lt.s32.totalorder %s223, 3
        %s227 = scalar_select %p226, %s223, 3
        %s228 = smul.addr %s225, 4
        %s229 = sadd.s32 %s227, %s228
        %s230 = smul.addr %s229, 8
        %s231 = scalar_lea.vmem %s0, %s230
        %s232 = smul.u32 2, %s20
      $region20: #{tpu_custom_call.1} parent=15 // pred_fallthru
        _
      // Predicated region
      $region21: #{tpu_custom_call.1} parent=15 // pred_check
        %p233 = pneg %p79
      $region22: #{tpu_custom_call.1} parent=15 // pred_check_branch
        %235 = sbr.rel (%p233) target = $region24
      $region23: #{tpu_custom_call.1} parent=15 // pred_region
        %p236 = scmp.lt.s32.totalorder %s21, 7
        %s237 = scalar_select %p236, %s21, 7
        %s238 = smul.addr %s237, 8
        %s239 = smul.addr %s238, 8
        %s240 = scalar_lea.vmem %s1, %s239
      $region24: #{tpu_custom_call.1} parent=15 // pred_fallthru
        _
      // Predicated region
      $region25: #{tpu_custom_call.1} parent=15 // pred_check
        %p241 = pneg %p105
      $region26: #{tpu_custom_call.1} parent=15 // pred_check_branch
        %243 = sbr.rel (%p241) target = $region28
      $region27: #{tpu_custom_call.1} parent=15 // pred_region
        %p244 = scmp.lt.s32.totalorder %s21, 7
        %s245 = scalar_select %p244, %s21, 7
        %s246 = scalar_lea.vmem %s2, %s245
      $region28: #{tpu_custom_call.1} parent=15 // pred_fallthru
        _
    $region16: #{tpu_custom_call.1} parent=5 // pred_fallthru
      _
    %p247 = scmp.le.s32.totalorder 1, %s12
    %p248 = scmp.lt.s32.totalorder %s12, 33
    %p249 = pnand %p247, %p248
    %p250 = pneg %p249
    // Predicated region
    $region29: #{tpu_custom_call.1} parent=5 // pred_check
      _
    $region30: #{tpu_custom_call.1} parent=5 // pred_check_branch
      %252 = sbr.rel (%p249) target = $region32
    $region31: #{tpu_custom_call.1} parent=5 // pred_region
      %s253 = ssub.s32 %s12, 1
      %s254 = smul.u32 2, %s23
      %p255 = scmp.lt.s32.totalorder %s22, 1
      %s256 = scalar_select %p255, %s22, 1
      %p257 = scmp.lt.s32.totalorder %s254, 3
      %s258 = scalar_select %p257, %s254, 3
      %s259 = smul.addr %s256, 4
      %s260 = sadd.s32 %s258, %s259
      %s261 = smul.addr %s260, 8
      %s262 = scalar_lea.vmem %s0, %s261
      %p263 = pneg %p59
      %p264 = pneg %p56
      %p265 = scmp.lt.s32.totalorder %s24, 7
      %s266 = scalar_select %p265, %s24, 7
      %s267 = smul.addr %s266, 8
      %s268 = smul.addr %s267, 8
      %s269 = scalar_lea.vmem %s1, %s268
      %p270 = pneg %p85
      %p271 = pneg %p82
      %p272 = scmp.lt.s32.totalorder %s24, 7
      %s273 = scalar_select %p272, %s24, 7
      %s274 = scalar_lea.vmem %s2, %s273
      %p275 = pneg %p111
      %p276 = pneg %p108
      %p277 = pneg %p141
      %p278 = pneg %p138
      %s279 = smul.u32 2, %s23
      %p280 = scmp.lt.s32.totalorder %s22, 1
      %s281 = scalar_select %p280, %s22, 1
      %p282 = scmp.lt.s32.totalorder %s24, 7
      %s283 = scalar_select %p282, %s24, 7
      %p284 = scmp.lt.s32.totalorder %s279, 3
      %s285 = scalar_select %p284, %s279, 3
      %s286 = smul.addr %s283, 4
      %s287 = sadd.s32 %s285, %s286
      %s288 = smul.addr %s281, 32
      %s289 = sadd.s32 %s287, %s288
      %s290 = smul.addr %s289, 8
      %s291 = scalar_lea.vmem %s3, %s290
      %p292 = pneg %p171
      %p293 = pneg %p168
      %s294 = smul.u32 2, %s23
      %p295 = scmp.lt.s32.totalorder %s22, 1
      %s296 = scalar_select %p295, %s22, 1
      %p297 = scmp.lt.s32.totalorder %s24, 7
      %s298 = scalar_select %p297, %s24, 7
      %p299 = scmp.lt.s32.totalorder %s294, 3
      %s300 = scalar_select %p299, %s294, 3
      %s301 = smul.addr %s298, 4
      %s302 = sadd.s32 %s300, %s301
      %s303 = smul.addr %s296, 32
      %s304 = sadd.s32 %s302, %s303
      %s305 = smul.addr %s304, 8
      %s306 = scalar_lea.vmem %s4, %s305
      %p307 = pneg %p201
      %p308 = pneg %p198
      %s309 = smul.u32 2, %s23
      %p310 = scmp.lt.s32.totalorder %s22, 1
      %s311 = scalar_select %p310, %s22, 1
      %p312 = scmp.lt.s32.totalorder %s24, 7
      %s313 = scalar_select %p312, %s24, 7
      %p314 = scmp.lt.s32.totalorder %s309, 3
      %s315 = scalar_select %p314, %s309, 3
      %s316 = smul.addr %s313, 4
      %s317 = sadd.s32 %s315, %s316
      %s318 = smul.addr %s311, 32
      %s319 = sadd.s32 %s317, %s318
      %s320 = smul.addr %s319, 8
      %s321 = scalar_lea.vmem %s5, %s320
      %s322 = smul.u32 2, %s23
      %p323 = scmp.lt.s32.totalorder %s22, 1
      %s324 = scalar_select %p323, %s22, 1
      %p325 = scmp.lt.s32.totalorder %s322, 3
      %s326 = scalar_select %p325, %s322, 3
      %s327 = smul.addr %s324, 4
      %s328 = sadd.s32 %s326, %s327
      %s329 = smul.addr %s328, 8
      %s330 = scalar_lea.vmem %s0, %s329
      %s331 = smul.u32 2, %s23
      %p332 = scmp.lt.s32.totalorder %s24, 7
      %s333 = scalar_select %p332, %s24, 7
      %s334 = smul.addr %s333, 8
      %s335 = smul.addr %s334, 8
      %s336 = scalar_lea.vmem %s1, %s335
      %p337 = scmp.lt.s32.totalorder %s24, 7
      %s338 = scalar_select %p337, %s24, 7
      %s339 = scalar_lea.vmem %s2, %s338
      %s340 = smul.u32 2, %s23
      %p341 = scmp.lt.s32.totalorder %s22, 1
      %s342 = scalar_select %p341, %s22, 1
      %p343 = scmp.lt.s32.totalorder %s24, 7
      %s344 = scalar_select %p343, %s24, 7
      %p345 = scmp.lt.s32.totalorder %s340, 3
      %s346 = scalar_select %p345, %s340, 3
      %s347 = smul.addr %s344, 4
      %s348 = sadd.s32 %s346, %s347
      %s349 = smul.addr %s342, 32
      %s350 = sadd.s32 %s348, %s349
      %s351 = smul.addr %s350, 8
      %s352 = scalar_lea.vmem %s3, %s351
      %s353 = smul.u32 2, %s23
      %s354 = smul.u32 2, %s23
      %p355 = scmp.lt.s32.totalorder %s22, 1
      %s356 = scalar_select %p355, %s22, 1
      %p357 = scmp.lt.s32.totalorder %s24, 7
      %s358 = scalar_select %p357, %s24, 7
      %p359 = scmp.lt.s32.totalorder %s354, 3
      %s360 = scalar_select %p359, %s354, 3
      %s361 = smul.addr %s358, 4
      %s362 = sadd.s32 %s360, %s361
      %s363 = smul.addr %s356, 32
      %s364 = sadd.s32 %s362, %s363
      %s365 = smul.addr %s364, 8
      %s366 = scalar_lea.vmem %s4, %s365
      %s367 = smul.u32 2, %s23
      %s368 = smul.u32 2, %s23
      %p369 = scmp.lt.s32.totalorder %s22, 1
      %s370 = scalar_select %p369, %s22, 1
      %p371 = scmp.lt.s32.totalorder %s24, 7
      %s372 = scalar_select %p371, %s24, 7
      %p373 = scmp.lt.s32.totalorder %s368, 3
      %s374 = scalar_select %p373, %s368, 3
      %s375 = smul.addr %s372, 4
      %s376 = sadd.s32 %s374, %s375
      %s377 = smul.addr %s370, 32
      %s378 = sadd.s32 %s376, %s377
      %s379 = smul.addr %s378, 8
      %s380 = scalar_lea.vmem %s5, %s379
      %s381 = smul.u32 2, %s23
      %v382 = vld [vmem:[%s330] sm:$0xff]
      %v383 = vld [vmem:[%s330 + $0x8] sm:$0xff]
      %v384 = vld [vmem:[%s336] sm:$0xff]
      %v385 = vld [vmem:[%s336 + $0x8] sm:$0xff]
      %v386 = vld [vmem:[%s336 + $0x10] sm:$0xff]
      %v387 = vld [vmem:[%s336 + $0x18] sm:$0xff]
      %v388 = vld [vmem:[%s336 + $0x20] sm:$0xff]
      %v389 = vld [vmem:[%s336 + $0x28] sm:$0xff]
      %v390 = vld [vmem:[%s336 + $0x30] sm:$0xff]
      %v391 = vld [vmem:[%s336 + $0x38] sm:$0xff]
      %v392 = vld [vmem:[%s339] sm:$0x1]
      %v394 = vperm.slane %v392, 0
      %vm396 = vcmask 523264
      %v398 = vsel %vm396, %v382, 0
      %v401 = vsel %vm396, %v383, 0
      %403 = vmatpush.msra.mxu0 0.0
      %404 = vmatpush.msra.mxu0 0.0
      %405 = vmatpush.msra.mxu0 0.0
      %406 = vmatpush.msra.mxu0 0.0
      %407 = vmatpush.msra.mxu0 0.0
      %408 = vmatpush.msra.mxu0 0.0
      %409 = vmatpush.msra.mxu0 0.0
      %410 = vmatpush.msra.mxu0 0.0
      %411 = vmatpush.msra.mxu0 %v391
      %412 = vmatpush.msra.mxu0 %v390
      %413 = vmatpush.msra.mxu0 %v389
      %414 = vmatpush.msra.mxu0 %v388
      %415 = vmatpush.msra.mxu0 %v387
      %416 = vmatpush.msra.mxu0 %v386
      %417 = vmatpush.msra.mxu0 %v385
      %418 = vmatpush.msra.mxu0 %v384
      %419 = vmatmul.f32.gmra.mxu0 %v398
      %v420 = vpop.f32.mrf.mxu0
      %v421 = vadd.f32 %v394, %v420
      %422 = vmatmul.f32.gmra.mxu0 %v401
      %v423 = vpop.f32.mrf.mxu0
      %v424 = vadd.f32 %v394, %v423
      %425 = vdwg.mxu0
      %vm426 = vcmask 64512
      %427 = vst.msk [vmem:[%s352] sm:$0xff] %vm426, %v421
      %428 = vst.msk [vmem:[%s352 + $0x8] sm:$0xff] %vm426, %v424
      %431 = vrot.lane.b32.xlu0 %v421, 120
      %v432 = vpop.permute.xlu0 %431
      %433 = vrot.lane.b32.xlu0 %v424, 120
      %v434 = vpop.permute.xlu0 %433
      %437 = vst.msk [vmem:[%s366] sm:$0xff] %vm426, %v432
      %438 = vst.msk [vmem:[%s366 + $0x8] sm:$0xff] %vm426, %v434
      %439 = vrot.lane.b32.xlu0 %v421, 112
      %v440 = vpop.permute.xlu0 %439
      %441 = vrot.lane.b32.xlu0 %v424, 112
      %v442 = vpop.permute.xlu0 %441
      %445 = vst.msk [vmem:[%s380] sm:$0xff] %vm426, %v440
      %446 = vst.msk [vmem:[%s380 + $0x8] sm:$0xff] %vm426, %v442
      %s447 = smul.u32 2, %s23
      %p448 = scmp.lt.s32.totalorder %s22, 1
      %s449 = scalar_select %p448, %s22, 1
      %p450 = scmp.lt.s32.totalorder %s24, 7
      %s451 = scalar_select %p450, %s24, 7
      %p452 = scmp.lt.s32.totalorder %s447, 3
      %s453 = scalar_select %p452, %s447, 3
      %s454 = smul.addr %s451, 4
      %s455 = sadd.s32 %s453, %s454
      %s456 = smul.addr %s449, 32
      %s457 = sadd.s32 %s455, %s456
      %s458 = smul.addr %s457, 8
      %s459 = scalar_lea.vmem %s3, %s458
      %s460 = smul.u32 2, %s23
      %p461 = scmp.lt.s32.totalorder %s22, 1
      %s462 = scalar_select %p461, %s22, 1
      %p463 = scmp.lt.s32.totalorder %s24, 7
      %s464 = scalar_select %p463, %s24, 7
      %p465 = scmp.lt.s32.totalorder %s460, 3
      %s466 = scalar_select %p465, %s460, 3
      %s467 = smul.addr %s464, 4
      %s468 = sadd.s32 %s466, %s467
      %s469 = smul.addr %s462, 32
      %s470 = sadd.s32 %s468, %s469
      %s471 = smul.addr %s470, 8
      %s472 = scalar_lea.vmem %s4, %s471
      %s473 = smul.u32 2, %s23
      %p474 = scmp.lt.s32.totalorder %s22, 1
      %s475 = scalar_select %p474, %s22, 1
      %p476 = scmp.lt.s32.totalorder %s24, 7
      %s477 = scalar_select %p476, %s24, 7
      %p478 = scmp.lt.s32.totalorder %s473, 3
      %s479 = scalar_select %p478, %s473, 3
      %s480 = smul.addr %s477, 4
      %s481 = sadd.s32 %s479, %s480
      %s482 = smul.addr %s475, 32
      %s483 = sadd.s32 %s481, %s482
      %s484 = smul.addr %s483, 8
      %s485 = scalar_lea.vmem %s5, %s484
      // Predicated region
      $region33: #{tpu_custom_call.1} parent=31 // pred_check
        %p486 = pneg %p138
      $region34: #{tpu_custom_call.1} parent=31 // pred_check_branch
        %488 = sbr.rel (%p486) target = $region36
      $region35: #{tpu_custom_call.1} parent=31 // pred_region
        %s489 = smul.u32 2, %s23
      $region36: #{tpu_custom_call.1} parent=31 // pred_fallthru
        _
      // Predicated region
      $region37: #{tpu_custom_call.1} parent=31 // pred_check
        %p490 = pneg %p168
      $region38: #{tpu_custom_call.1} parent=31 // pred_check_branch
        %492 = sbr.rel (%p490) target = $region40
      $region39: #{tpu_custom_call.1} parent=31 // pred_region
        %s493 = smul.u32 2, %s23
      $region40: #{tpu_custom_call.1} parent=31 // pred_fallthru
        _
      // Predicated region
      $region41: #{tpu_custom_call.1} parent=31 // pred_check
        %p494 = pneg %p198
      $region42: #{tpu_custom_call.1} parent=31 // pred_check_branch
        %496 = sbr.rel (%p494) target = $region44
      $region43: #{tpu_custom_call.1} parent=31 // pred_region
        %s497 = smul.u32 2, %s23
      $region44: #{tpu_custom_call.1} parent=31 // pred_fallthru
        _
    $region32: #{tpu_custom_call.1} parent=5 // pred_fallthru
      _
    %p498 = scmp.le.s32.totalorder 2, %s12
    // Predicated region
    $region45: #{tpu_custom_call.1} parent=5 // pred_check
      %p499 = pneg %p498
    $region46: #{tpu_custom_call.1} parent=5 // pred_check_branch
      %501 = sbr.rel (%p499) target = $region48
    $region47: #{tpu_custom_call.1} parent=5 // pred_region
      %s502 = ssub.s32 %s12, 2
      // Predicated region
      $region49: #{tpu_custom_call.1} parent=47 // pred_check
        %p503 = pneg %p144
      $region50: #{tpu_custom_call.1} parent=47 // pred_check_branch
        %505 = sbr.rel (%p503) target = $region52
      $region51: #{tpu_custom_call.1} parent=47 // pred_region
        %s506 = smul.u32 2, %s26
        %p507 = scmp.lt.s32.totalorder %s25, 1
        %s508 = scalar_select %p507, %s25, 1
        %p509 = scmp.lt.s32.totalorder %s27, 7
        %s510 = scalar_select %p509, %s27, 7
        %p511 = scmp.lt.s32.totalorder %s506, 3
        %s512 = scalar_select %p511, %s506, 3
        %s513 = smul.addr %s510, 4
        %s514 = sadd.s32 %s512, %s513
        %s515 = smul.addr %s508, 32
        %s516 = sadd.s32 %s514, %s515
        %s517 = smul.addr %s516, 8
        %s518 = scalar_lea.vmem %s3, %s517
      $region52: #{tpu_custom_call.1} parent=47 // pred_fallthru
        _
      // Predicated region
      $region53: #{tpu_custom_call.1} parent=47 // pred_check
        %p519 = pneg %p174
      $region54: #{tpu_custom_call.1} parent=47 // pred_check_branch
        %521 = sbr.rel (%p519) target = $region56
      $region55: #{tpu_custom_call.1} parent=47 // pred_region
        %s522 = smul.u32 2, %s26
        %p523 = scmp.lt.s32.totalorder %s25, 1
        %s524 = scalar_select %p523, %s25, 1
        %p525 = scmp.lt.s32.totalorder %s27, 7
        %s526 = scalar_select %p525, %s27, 7
        %p527 = scmp.lt.s32.totalorder %s522, 3
        %s528 = scalar_select %p527, %s522, 3
        %s529 = smul.addr %s526, 4
        %s530 = sadd.s32 %s528, %s529
        %s531 = smul.addr %s524, 32
        %s532 = sadd.s32 %s530, %s531
        %s533 = smul.addr %s532, 8
        %s534 = scalar_lea.vmem %s4, %s533
      $region56: #{tpu_custom_call.1} parent=47 // pred_fallthru
        _
      // Predicated region
      $region57: #{tpu_custom_call.1} parent=47 // pred_check
        %p535 = pneg %p204
      $region58: #{tpu_custom_call.1} parent=47 // pred_check_branch
        %537 = sbr.rel (%p535) target = $region60
      $region59: #{tpu_custom_call.1} parent=47 // pred_region
        %s538 = smul.u32 2, %s26
        %p539 = scmp.lt.s32.totalorder %s25, 1
        %s540 = scalar_select %p539, %s25, 1
        %p541 = scmp.lt.s32.totalorder %s27, 7
        %s542 = scalar_select %p541, %s27, 7
        %p543 = scmp.lt.s32.totalorder %s538, 3
        %s544 = scalar_select %p543, %s538, 3
        %s545 = smul.addr %s542, 4
        %s546 = sadd.s32 %s544, %s545
        %s547 = smul.addr %s540, 32
        %s548 = sadd.s32 %s546, %s547
        %s549 = smul.addr %s548, 8
        %s550 = scalar_lea.vmem %s5, %s549
      $region60: #{tpu_custom_call.1} parent=47 // pred_fallthru
        _
    $region48: #{tpu_custom_call.1} parent=5 // pred_fallthru
      _
  $region6: #{tpu_custom_call.1} parent=0 // loop_footer
    %s16 = sadd.s32 1, %s12
  $region7: #{tpu_custom_call.1} parent=0 // loop_footer_branch
    %11 = sbr.rel target = $region3
  $region8: #{tpu_custom_call.1} parent=0 // loop_exit
    _

</llo_original>
